<compile_context>
chip_gen: v6e
topology: v6e:2x2x1
jax: 0.10.0
libtpu: 0.0.40
codegen_flags: <defaults>
</compile_context>

<pallas_src>
import functools

import jax
import jax.numpy as jnp
from jax.experimental import pallas as pl
from jax.experimental.pallas import tpu as pltpu

EPS = 1e-5


def _make_prenorm_kernel(d_valid: int, d_pad: int):
    """Kernel factory: closes over the (static) valid / padded feature dims."""
    need_mask = d_pad != d_valid
    inv_d = 1.0 / float(d_valid)

    def kernel(x_ref, g_ref, b_ref, w_ref, wb_ref, o_ref):
        # x_ref: (TR, D_pad) tile of rows.  LayerNorm stats in f32 over the
        # valid D lanes, then y @ W (+ bias) on the MXU with f32 accumulation.
        x = x_ref[...].astype(jnp.float32)

        if need_mask:
            # Padded lanes of x are zero, so the plain sum is already the sum
            # over valid lanes; only the centered term needs masking so that
            # padding does not leak into the variance.
            lane = jax.lax.broadcasted_iota(jnp.int32, (1, d_pad), 1)
            mask = (lane < d_valid).astype(jnp.float32)
            mean = jnp.sum(x, axis=-1, keepdims=True) * inv_d
            cent = (x - mean) * mask
        else:
            mean = jnp.sum(x, axis=-1, keepdims=True) * inv_d
            cent = x - mean

        var = jnp.sum(cent * cent, axis=-1, keepdims=True) * inv_d
        xn = cent * jax.lax.rsqrt(var + EPS)

        # gamma/beta are already f32 (1, D_pad): no per-iteration casts.
        # Padded lanes end up exactly 0 (cent==0, beta pad==0), so the padded
        # rows of W contribute nothing to the matmul.
        y = xn * g_ref[...] + b_ref[...]

        # Feed the MXU in W's storage dtype (bf16 in production), f32 acc.
        y = y.astype(w_ref.dtype)
        out = jnp.dot(y, w_ref[...], preferred_element_type=jnp.float32)
        out = out + wb_ref[...]
        o_ref[...] = out.astype(o_ref.dtype)

    return kernel


@functools.partial(jax.jit, static_argnames=("tile_rows",))
def prenorm_linear(x, gamma, beta, w, wb, *, tile_rows: int = 512):
    """x: (B, S, D).  gamma/beta: (D,).  w: (D, D) laid out for y @ w.  wb: (D,)."""
    B, S, D = x.shape
    N = B * S

    x_bytes = jnp.dtype(x.dtype).itemsize
    w_bytes = jnp.dtype(w.dtype).itemsize

    # Lane-dense feature dim.
    d_pad = pl.cdiv(D, 128) * 128

    # Row-tile sizing: sublane multiple per dtype, shrink for tiny N, and
    # shrink further so double-buffered tiles + resident W fit a VMEM budget
    # that is safe on every chip (v7x has 64 MiB / TC).
    row_mult = 16 if x.dtype == jnp.bfloat16 else 8
    tr = min(tile_rows, max(N, row_mult))

    vmem_budget = 40 * 2**20
    w_footprint = d_pad * d_pad * w_bytes + 8 * d_pad * 4   # W + params
    tile_budget = max(vmem_budget - w_footprint, 4 * row_mult * d_pad * x_bytes)
    max_tr = tile_budget // (4 * d_pad * x_bytes)            # 2x in + 2x out bufs
    tr = min(tr, int(max_tr))
    tr = max(row_mult, (tr // row_mult) * row_mult)

    n_pad = pl.cdiv(N, tr) * tr

    xf = x.reshape(N, D)
    xf = jnp.pad(xf, ((0, n_pad - N), (0, d_pad - D)))

    g2 = jnp.pad(gamma.astype(jnp.float32), (0, d_pad - D)).reshape(1, d_pad)
    b2 = jnp.pad(beta.astype(jnp.float32), (0, d_pad - D)).reshape(1, d_pad)
    wb2 = jnp.pad(wb.astype(jnp.float32), (0, d_pad - D)).reshape(1, d_pad)
    w2 = jnp.pad(w, ((0, d_pad - D), (0, d_pad - D)))

    # VMEM: double-buffered x + out tiles, resident W, small params, headroom.
    vmem_needed = (2 * tr * d_pad * x_bytes          # x tiles (double buffered)
                   + 2 * tr * d_pad * x_bytes        # out tiles
                   + w_footprint)                    # resident W + params
    vmem_limit = int(min(max(2 * vmem_needed, 16 * 2**20), 64 * 2**20))

    cost = pl.CostEstimate(
        flops=2 * n_pad * d_pad * d_pad,
        transcendentals=n_pad,
        bytes_accessed=(2 * n_pad * d_pad * x_bytes + d_pad * d_pad * w_bytes),
    )

    kernel = _make_prenorm_kernel(D, d_pad)

    out = pl.pallas_call(
        kernel,
        out_shape=jax.ShapeDtypeStruct((n_pad, d_pad), x.dtype),
        grid_spec=pltpu.PrefetchScalarGridSpec(
            num_scalar_prefetch=0,
            grid=(n_pad // tr,),
            in_specs=[
                pl.BlockSpec((tr, d_pad), lambda i: (i, 0)),      # x rows
                pl.BlockSpec((1, d_pad), lambda i: (0, 0)),       # gamma (f32)
                pl.BlockSpec((1, d_pad), lambda i: (0, 0)),       # beta  (f32)
                pl.BlockSpec((d_pad, d_pad), lambda i: (0, 0)),   # W (resident)
                pl.BlockSpec((1, d_pad), lambda i: (0, 0)),       # W bias (f32)
            ],
            out_specs=pl.BlockSpec((tr, d_pad), lambda i: (i, 0)),
        ),
        compiler_params=pltpu.CompilerParams(
            dimension_semantics=("parallel",),
            vmem_limit_bytes=vmem_limit,
        ),
        cost_estimate=cost,
    )(xf, g2, b2, w2, wb2)

    return out[:N, :D].reshape(B, S, D)


def prenorm_reference(x, gamma, beta, w, wb):
    xf = x.astype(jnp.float32)
    mean = jnp.mean(xf, axis=-1, keepdims=True)
    var = jnp.mean((xf - mean) ** 2, axis=-1, keepdims=True)
    xn = (xf - mean) * jax.lax.rsqrt(var + EPS)
    y = xn * gamma.astype(jnp.float32) + beta.astype(jnp.float32)
    out = y @ w.astype(jnp.float32) + wb.astype(jnp.float32)
    return out.astype(x.dtype)


if __name__ == "__main__":
    key = jax.random.PRNGKey(0)
    k_x, k_w, k_b = jax.random.split(key, 3)

    B, S, D = 2, 8, 32  # batch, seq, hidden (dim)
    x = jax.random.normal(k_x, (B, S, D), dtype=jnp.float32)

    # LayerNorm params: torch defaults (weight=1, bias=0).
    gamma = jnp.ones((D,), jnp.float32)
    beta = jnp.zeros((D,), jnp.float32)

    # fn = Linear(D, D); deterministic init. Stored as (D_in, D_out) so y @ w.
    w = jax.random.normal(k_w, (D, D), dtype=jnp.float32) * 0.02
    wb = jax.random.normal(k_b, (D,), dtype=jnp.float32) * 0.02

    out = prenorm_linear(x, gamma, beta, w, wb)
    out = jax.block_until_ready(out)

    ref = prenorm_reference(x, gamma, beta, w, wb)
    assert out.shape == (B, S, D)
    assert jnp.allclose(out, ref, atol=1e-4, rtol=1e-4), "mismatch vs reference"
    print("KERNEL_OK")
</pallas_src>

<mosaic_0001>
module attributes {stable_mosaic.version = 11 : i64} {
  func.func @kernel(%arg0: i32, %arg1: memref<16x128xf32, #tpu.memory_space<vmem>>, %arg2: memref<1x128xf32, #tpu.memory_space<vmem>>, %arg3: memref<1x128xf32, #tpu.memory_space<vmem>>, %arg4: memref<128x128xf32, #tpu.memory_space<vmem>>, %arg5: memref<1x128xf32, #tpu.memory_space<vmem>>, %arg6: memref<16x128xf32, #tpu.memory_space<vmem>>) attributes {dimension_semantics = [#tpu.dimension_semantics<parallel>], iteration_bounds = array<i64: 1>, scalar_prefetch = 0 : i64, scratch_operands = 0 : i64, tpu.core_type = #tpu.core_type<tc>, window_params = [{transform_indices = @transform_0, window_bounds = array<i64: 16, 128>}, {pipeline_mode = #tpu.pipeline_mode<synchronous>, transform_indices = @transform_1, window_bounds = array<i64: 1, 128>}, {pipeline_mode = #tpu.pipeline_mode<synchronous>, transform_indices = @transform_2, window_bounds = array<i64: 1, 128>}, {pipeline_mode = #tpu.pipeline_mode<synchronous>, transform_indices = @transform_3, window_bounds = array<i64: 128, 128>}, {pipeline_mode = #tpu.pipeline_mode<synchronous>, transform_indices = @transform_4, window_bounds = array<i64: 1, 128>}, {transform_indices = @transform_5, window_bounds = array<i64: 16, 128>}]} {
    %c0 = arith.constant 0 : index
    %c0_0 = arith.constant 0 : index
    %0 = vector.load %arg1[%c0, %c0_0] : memref<16x128xf32, #tpu.memory_space<vmem>>, vector<16x128xf32>
    %1 = tpu.iota {dimensions = array<i32: 1>} : vector<1x128xi32>
    %c32_i32 = arith.constant 32 : i32
    %2 = vector.broadcast %c32_i32 : i32 to vector<1x128xi32>
    %3 = arith.cmpi slt, %1, %2 : vector<1x128xi32>
    %4 = arith.extui %3 : vector<1x128xi1> to vector<1x128xi32>
    %5 = arith.sitofp %4 : vector<1x128xi32> to vector<1x128xf32>
    %cst = arith.constant dense<0.000000e+00> : vector<16xf32>
    %6 = vector.multi_reduction <add>, %0, %cst [1] : vector<16x128xf32> to vector<16xf32>
    %7 = vector.shape_cast %6 : vector<16xf32> to vector<16x1xf32>
    %cst_1 = arith.constant 3.125000e-02 : f32
    %8 = vector.broadcast %cst_1 : f32 to vector<16x1xf32>
    %9 = arith.mulf %7, %8 : vector<16x1xf32>
    %10 = vector.broadcast %9 : vector<16x1xf32> to vector<16x128xf32>
    %11 = arith.subf %0, %10 : vector<16x128xf32>
    %12 = vector.broadcast %5 : vector<1x128xf32> to vector<16x128xf32>
    %13 = arith.mulf %11, %12 : vector<16x128xf32>
    %14 = arith.mulf %13, %13 : vector<16x128xf32>
    %cst_2 = arith.constant dense<0.000000e+00> : vector<16xf32>
    %15 = vector.multi_reduction <add>, %14, %cst_2 [1] : vector<16x128xf32> to vector<16xf32>
    %16 = vector.shape_cast %15 : vector<16xf32> to vector<16x1xf32>
    %cst_3 = arith.constant 3.125000e-02 : f32
    %17 = vector.broadcast %cst_3 : f32 to vector<16x1xf32>
    %18 = arith.mulf %16, %17 : vector<16x1xf32>
    %cst_4 = arith.constant 9.99999974E-6 : f32
    %19 = vector.broadcast %cst_4 : f32 to vector<16x1xf32>
    %20 = arith.addf %18, %19 : vector<16x1xf32>
    %21 = math.rsqrt %20 : vector<16x1xf32>
    %22 = vector.broadcast %21 : vector<16x1xf32> to vector<16x128xf32>
    %23 = arith.mulf %13, %22 : vector<16x128xf32>
    %c0_5 = arith.constant 0 : index
    %c0_6 = arith.constant 0 : index
    %24 = vector.load %arg2[%c0_5, %c0_6] : memref<1x128xf32, #tpu.memory_space<vmem>>, vector<1x128xf32>
    %25 = vector.broadcast %24 : vector<1x128xf32> to vector<16x128xf32>
    %26 = arith.mulf %23, %25 : vector<16x128xf32>
    %c0_7 = arith.constant 0 : index
    %c0_8 = arith.constant 0 : index
    %27 = vector.load %arg3[%c0_7, %c0_8] : memref<1x128xf32, #tpu.memory_space<vmem>>, vector<1x128xf32>
    %28 = vector.broadcast %27 : vector<1x128xf32> to vector<16x128xf32>
    %29 = arith.addf %26, %28 : vector<16x128xf32>
    %c0_9 = arith.constant 0 : index
    %c0_10 = arith.constant 0 : index
    %30 = vector.load %arg4[%c0_9, %c0_10] : memref<128x128xf32, #tpu.memory_space<vmem>>, vector<128x128xf32>
    %cst_11 = arith.constant dense<0.000000e+00> : vector<16x128xf32>
    %31 = tpu.matmul %29, %30, %cst_11 {dimension_numbers = #tpu.dot_dimension_numbers<[1], [0], [0], [1], [0, 0, 1, 1], [], []>} : vector<16x128xf32>, vector<128x128xf32>, vector<16x128xf32> -> vector<16x128xf32>
    %c0_12 = arith.constant 0 : index
    %c0_13 = arith.constant 0 : index
    %32 = vector.load %arg5[%c0_12, %c0_13] : memref<1x128xf32, #tpu.memory_space<vmem>>, vector<1x128xf32>
    %33 = vector.broadcast %32 : vector<1x128xf32> to vector<16x128xf32>
    %34 = arith.addf %31, %33 : vector<16x128xf32>
    %c0_14 = arith.constant 0 : index
    %c0_15 = arith.constant 0 : index
    %35 = vector.load %arg6[%c0_14, %c0_15] : memref<16x128xf32, #tpu.memory_space<vmem>>, vector<16x128xf32>
    tpu.vector_store %arg6[%c0_14, %c0_15], %34 {strides = array<i32>} : memref<16x128xf32, #tpu.memory_space<vmem>>, vector<16x128xf32>,
    return
  }
  func.func @transform_0(%arg0: i32) -> (i32, i32) {
    %c0_i32 = arith.constant 0 : i32
    %c0_i32_0 = arith.constant 0 : i32
    return %arg0, %c0_i32 : i32, i32
  }
  func.func @transform_1(%arg0: i32) -> (i32, i32) {
    %c0_i32 = arith.constant 0 : i32
    %c0_i32_0 = arith.constant 0 : i32
    %c0_i32_1 = arith.constant 0 : i32
    return %c0_i32, %c0_i32_0 : i32, i32
  }
  func.func @transform_2(%arg0: i32) -> (i32, i32) {
    %c0_i32 = arith.constant 0 : i32
    %c0_i32_0 = arith.constant 0 : i32
    %c0_i32_1 = arith.constant 0 : i32
    return %c0_i32, %c0_i32_0 : i32, i32
  }
  func.func @transform_3(%arg0: i32) -> (i32, i32) {
    %c0_i32 = arith.constant 0 : i32
    %c0_i32_0 = arith.constant 0 : i32
    %c0_i32_1 = arith.constant 0 : i32
    return %c0_i32, %c0_i32_0 : i32, i32
  }
  func.func @transform_4(%arg0: i32) -> (i32, i32) {
    %c0_i32 = arith.constant 0 : i32
    %c0_i32_0 = arith.constant 0 : i32
    %c0_i32_1 = arith.constant 0 : i32
    return %c0_i32, %c0_i32_0 : i32, i32
  }
  func.func @transform_5(%arg0: i32) -> (i32, i32) {
    %c0_i32 = arith.constant 0 : i32
    %c0_i32_0 = arith.constant 0 : i32
    return %arg0, %c0_i32 : i32, i32
  }
}

</mosaic_0001>

<llo_original>
// kernel: prenorm_linear.1
$region0: #{prenorm_linear.1}
  #allocation0 [shape = 'u32[]', space=smem, size = 0x4, offset = 0x4, fixed_abs, tag = 'smem constant byte address 0x4 - core index']
  #allocation1 [shape = 'u32[144,128]{1,0:T(1,128)}', space=vmem, size = 0x12000, scoped, tag = 'internal scratch']
  %s0 = inlined_call_operand.vmem [shape: f32[16,128], index: 0, kind: input, shape index: {}]
  %s1 = inlined_call_operand.vmem [shape: f32[1,128], index: 1, kind: input, shape index: {}]
  %s2 = inlined_call_operand.vmem [shape: f32[1,128], index: 2, kind: input, shape index: {}]
  %s3 = inlined_call_operand.vmem [shape: f32[128,128], index: 3, kind: input, shape index: {}]
  %s4 = inlined_call_operand.vmem [shape: f32[1,128], index: 4, kind: input, shape index: {}]
  %s5 = inlined_call_operand.vmem [shape: f32[16,128], index: 5, kind: output, shape index: {}]
  %s6 = sld [smem:[#allocation0]]
  $region30: #{prenorm_linear.1} parent=0
    _
  %s8 = ssub.s32 1, %s6
  %s9 = scalar_select 0, %s8, %s6
  // Predicated region
  $region2: #{prenorm_linear.1} parent=0 // pred_check
    _
  $region3: #{prenorm_linear.1} parent=0 // pred_check_branch
    %11 = sbr.rel (0) target = $region5
  $region4: #{prenorm_linear.1} parent=0 // pred_region
    _
  $region5: #{prenorm_linear.1} parent=0 // pred_fallthru
    _
  // Predicated region
  $region6: #{prenorm_linear.1} parent=0 // pred_check
    _
  $region7: #{prenorm_linear.1} parent=0 // pred_check_branch
    %13 = sbr.rel (0) target = $region9
  $region8: #{prenorm_linear.1} parent=0 // pred_region
    _
  $region9: #{prenorm_linear.1} parent=0 // pred_fallthru
    _
  // Predicated region
  $region10: #{prenorm_linear.1} parent=0 // pred_check
    _
  $region11: #{prenorm_linear.1} parent=0 // pred_check_branch
    %15 = sbr.rel (0) target = $region13
  $region12: #{prenorm_linear.1} parent=0 // pred_region
    _
  $region13: #{prenorm_linear.1} parent=0 // pred_fallthru
    _
  // Predicated region
  $region14: #{prenorm_linear.1} parent=0 // pred_check
    _
  $region15: #{prenorm_linear.1} parent=0 // pred_check_branch
    %17 = sbr.rel (0) target = $region17
  $region16: #{prenorm_linear.1} parent=0 // pred_region
    _
  $region17: #{prenorm_linear.1} parent=0 // pred_fallthru
    _
  // Predicated region
  $region18: #{prenorm_linear.1} parent=0 // pred_check
    _
  $region19: #{prenorm_linear.1} parent=0 // pred_check_branch
    %19 = sbr.rel (0) target = $region21
  $region20: #{prenorm_linear.1} parent=0 // pred_region
    _
  $region21: #{prenorm_linear.1} parent=0 // pred_fallthru
    _
  %v20 = vld [vmem:[%s0] sm:$0xff]
  %v21 = vld [vmem:[%s0 + $0x8] sm:$0xff]
  %v22 = vlaneseq
  %v23 = vand.u32 %v22, 127
  %vm24 = vcmp.lt.s32.totalorder %v23, 32
  %v25 = vsel %vm24, 1, 0
  %v26 = vcvt.s32.f32 %v25
  %27 = vadd.xlane.f32.xlu0 %v20
  %v28 = vpop.xlane.xlu0 %27
  %29 = vadd.xlane.f32.xlu0 %v21
  %v30 = vpop.xlane.xlu0 %29
  %v31 = vmul.f32 %v28, 0.03125
  %v32 = vmul.f32 %v30, 0.03125
  %v33 = vsub.f32 %v20, %v31
  %v34 = vsub.f32 %v21, %v32
  %v35 = vmul.f32 %v33, %v26
  %v36 = vmul.f32 %v34, %v26
  %v37 = vmul.f32 %v35, %v35
  %v38 = vmul.f32 %v36, %v36
  %39 = vadd.xlane.f32.xlu0 %v37
  %v40 = vpop.xlane.xlu0 %39
  %41 = vadd.xlane.f32.xlu0 %v38
  %v42 = vpop.xlane.xlu0 %41
  %v43 = vmul.f32 %v40, 0.03125
  %v44 = vmul.f32 %v42, 0.03125
  %v45 = vadd.f32 %v43, 1e-05
  %v46 = vadd.f32 %v44, 1e-05
  %v47 = vrsqrt.pop %v45
  %v48 = vrsqrt.pop %v46
  %v49 = vmul.f32 %v35, %v47
  %v50 = vmul.f32 %v36, %v48
  %v51 = vld [vmem:[%s1] sm:$0x1]
  %v53 = vlaneseq
  %v54 = vshrl.u32 %v53, 7
  %v55 = vsub.s32 0, %v54
  %v56 = vrot.slane %v51, %v55
  %v58 = vmul.f32 %v49, %v56
  %v59 = vmul.f32 %v50, %v56
  %v60 = vld [vmem:[%s2] sm:$0x1]
  %v62 = vlaneseq
  %v63 = vshrl.u32 %v62, 7
  %v64 = vsub.s32 0, %v63
  %v65 = vrot.slane %v60, %v64
  %v67 = vadd.f32 %v58, %v65
  %v68 = vadd.f32 %v59, %v65
  %v69 = vld [vmem:[%s3] sm:$0xff]
  %v70 = vld [vmem:[%s3 + $0x8] sm:$0xff]
  %v71 = vld [vmem:[%s3 + $0x10] sm:$0xff]
  %v72 = vld [vmem:[%s3 + $0x18] sm:$0xff]
  %v73 = vld [vmem:[%s3 + $0x20] sm:$0xff]
  %v74 = vld [vmem:[%s3 + $0x28] sm:$0xff]
  %v75 = vld [vmem:[%s3 + $0x30] sm:$0xff]
  %v76 = vld [vmem:[%s3 + $0x38] sm:$0xff]
  %v77 = vld [vmem:[%s3 + $0x40] sm:$0xff]
  %v78 = vld [vmem:[%s3 + $0x48] sm:$0xff]
  %v79 = vld [vmem:[%s3 + $0x50] sm:$0xff]
  %v80 = vld [vmem:[%s3 + $0x58] sm:$0xff]
  %v81 = vld [vmem:[%s3 + $0x60] sm:$0xff]
  %v82 = vld [vmem:[%s3 + $0x68] sm:$0xff]
  %v83 = vld [vmem:[%s3 + $0x70] sm:$0xff]
  %v84 = vld [vmem:[%s3 + $0x78] sm:$0xff]
  %v85 = vld [vmem:[%s4] sm:$0x1]
  %v87 = vlaneseq
  %v88 = vshrl.u32 %v87, 7
  %v89 = vsub.s32 0, %v88
  %v90 = vrot.slane %v85, %v89
  %92 = vmatprep.subr.mxu0 0.0
  %93 = vmatpush1.msra.mxu0 %v84
  %94 = vmatprep.subr.mxu0 0.0
  %95 = vmatpush1.msra.mxu0 %v83
  %96 = vmatprep.subr.mxu0 0.0
  %97 = vmatpush1.msra.mxu0 %v82
  %98 = vmatprep.subr.mxu0 0.0
  %99 = vmatpush1.msra.mxu0 %v81
  %100 = vmatprep.subr.mxu0 0.0
  %101 = vmatpush1.msra.mxu0 %v80
  %102 = vmatprep.subr.mxu0 0.0
  %103 = vmatpush1.msra.mxu0 %v79
  %104 = vmatprep.subr.mxu0 0.0
  %105 = vmatpush1.msra.mxu0 %v78
  %106 = vmatprep.subr.mxu0 0.0
  %107 = vmatpush1.msra.mxu0 %v77
  %108 = vmatprep.subr.mxu0 0.0
  %109 = vmatpush1.msra.mxu0 %v76
  %110 = vmatprep.subr.mxu0 0.0
  %111 = vmatpush1.msra.mxu0 %v75
  %112 = vmatprep.subr.mxu0 0.0
  %113 = vmatpush1.msra.mxu0 %v74
  %114 = vmatprep.subr.mxu0 0.0
  %115 = vmatpush1.msra.mxu0 %v73
  %116 = vmatprep.subr.mxu0 0.0
  %117 = vmatpush1.msra.mxu0 %v72
  %118 = vmatprep.subr.mxu0 0.0
  %119 = vmatpush1.msra.mxu0 %v71
  %120 = vmatprep.subr.mxu0 0.0
  %121 = vmatpush1.msra.mxu0 %v70
  %122 = vmatprep.subr.mxu0 0.0
  %123 = vmatpush1.msra.mxu0 %v69
  %124 = vmatprep.subr.mxu0 0.0
  %125 = vmatpush2.msra.mxu0 0.0
  %126 = vmatprep.subr.mxu0 0.0
  %127 = vmatpush2.msra.mxu0 0.0
  %128 = vmatprep.subr.mxu0 0.0
  %129 = vmatpush2.msra.mxu0 0.0
  %130 = vmatprep.subr.mxu0 0.0
  %131 = vmatpush2.msra.mxu0 0.0
  %132 = vmatprep.subr.mxu0 0.0
  %133 = vmatpush2.msra.mxu0 0.0
  %134 = vmatprep.subr.mxu0 0.0
  %135 = vmatpush2.msra.mxu0 0.0
  %136 = vmatprep.subr.mxu0 0.0
  %137 = vmatpush2.msra.mxu0 0.0
  %138 = vmatprep.subr.mxu0 0.0
  %139 = vmatpush2.msra.mxu0 0.0
  %140 = vmatprep.subr.mxu0 0.0
  %141 = vmatpush2.msra.mxu0 0.0
  %142 = vmatprep.subr.mxu0 0.0
  %143 = vmatpush2.msra.mxu0 0.0
  %144 = vmatprep.subr.mxu0 0.0
  %145 = vmatpush2.msra.mxu0 0.0
  %146 = vmatprep.subr.mxu0 0.0
  %147 = vmatpush2.msra.mxu0 0.0
  %148 = vmatprep.subr.mxu0 0.0
  %149 = vmatpush2.msra.mxu0 0.0
  %150 = vmatprep.subr.mxu0 0.0
  %151 = vmatpush2.msra.mxu0 0.0
  %152 = vmatprep.subr.mxu0 0.0
  %153 = vmatpush2.msra.mxu0 0.0
  %154 = vmatprep.subr.mxu0 0.0
  %155 = vmatpush2.msra.mxu0 0.0
  %156 = vmatprep.mubr.f32.mxu0 0.0
  %157 = vmatmul.mubr.f32.gmra.mxu0 %v67
  %v158 = vpop.f32.mrf.mxu0
  %v159 = vadd.f32 %v90, %v158
  %v160 = vpop.f32.mrf.mxu0
  %161 = vmatprep.mubr.f32.mxu0 0.0
  %162 = vmatmul.mubr.f32.gmra.mxu0 %v68
  %v163 = vpop.f32.mrf.mxu0
  %v164 = vadd.f32 %v90, %v163
  %v165 = vpop.f32.mrf.mxu0
  %166 = vdwg.mxu0
  %167 = vst [vmem:[%s5] sm:$0xff] %v159
  %168 = vst [vmem:[%s5 + $0x8] sm:$0xff] %v164
  // Predicated region
  $region22: #{prenorm_linear.1} parent=0 // pred_check
    _
  $region23: #{prenorm_linear.1} parent=0 // pred_check_branch
    %170 = sbr.rel (0) target = $region25
  $region24: #{prenorm_linear.1} parent=0 // pred_region
    _
  $region25: #{prenorm_linear.1} parent=0 // pred_fallthru
    _
  // Predicated region
  $region26: #{prenorm_linear.1} parent=0 // pred_check
    _
  $region27: #{prenorm_linear.1} parent=0 // pred_check_branch
    %172 = sbr.rel (0) target = $region29
  $region28: #{prenorm_linear.1} parent=0 // pred_region
    _
  $region29: #{prenorm_linear.1} parent=0 // pred_fallthru
    _

</llo_original>
